<compile_context>
chip_gen: v6e
topology: v6e:2x2x1
jax: 0.10.0
libtpu: 0.0.40
codegen_flags: <defaults>
</compile_context>

<pallas_src>
import jax
import jax.numpy as jnp
from jax.experimental import pallas as pl
from jax.experimental.pallas import tpu as pltpu


_SUBLANES = 8
# ~2 MiB per operand per grid step: 3 refs x 2 buffers x 2 MiB = 12 MiB total,
# within the default scoped-VMEM budget of v5e (16 MiB) / v6e / v7x (32 MiB).
_BLOCK_BYTES_PER_OPERAND = 2 * 1024 * 1024


# ---------------------------------------------------------------------------
# Pallas kernel: clamp + trimap-masked overwrite + *255 (fused epilogue)
# ---------------------------------------------------------------------------
def _postprocess_kernel(sample_ref, trimap_ref, out_ref):
    a = jnp.clip(sample_ref[...], 0.0, 1.0)                  # torch.clamp(sample, 0, 1)
    tm = trimap_ref[...]
    a = jnp.where(tm == 0, jnp.asarray(0.0, a.dtype), a)     # alpha[trimap==0] = 0
    a = jnp.where(tm == 2, jnp.asarray(1.0, a.dtype), a)     # alpha[trimap==2] = 1
    out_ref[...] = (a * jnp.asarray(255.0, a.dtype)).astype(out_ref.dtype)


def _postprocess_alpha(sample, trimap, *, block_bytes=_BLOCK_BYTES_PER_OPERAND):
    """clamp + trimap overwrite + *255 on the [0, 0] slab of (B, C, H, W) inputs.

    The [0, 0] slab is addressed inside the BlockSpec (no slice copy in HBM).
    Returns an (H, W) array in sample.dtype.
    """
    assert sample.shape == trimap.shape and sample.ndim == 4
    _, _, H, W = sample.shape
    itemsize = jnp.dtype(sample.dtype).itemsize

    # Byte-budget row tiling (multiple of 8 sublanes).  Collapse to a single
    # full block when the slab already fits the budget.
    tile_r = block_bytes // max(W * itemsize, 1)
    tile_r = max(_SUBLANES, (tile_r // _SUBLANES) * _SUBLANES)
    if tile_r >= H:
        tile_r = H                      # block == full slab, grid of one step
    grid = (pl.cdiv(H, tile_r),)

    # Leading (batch, channel) dims are squeezed out of the kernel refs and
    # pinned to (0, 0) by the index_map, so the kernel streams only the
    # consumed slab directly out of the full HBM arrays.
    in_spec = pl.BlockSpec((None, None, tile_r, W), lambda i: (0, 0, i, 0))
    out_spec = pl.BlockSpec((tile_r, W), lambda i: (i, 0))

    return pl.pallas_call(
        _postprocess_kernel,
        out_shape=jax.ShapeDtypeStruct((H, W), sample.dtype),
        grid=grid,
        in_specs=[in_spec, in_spec],
        out_specs=out_spec,
        compiler_params=pltpu.CompilerParams(
            dimension_semantics=("parallel",)),   # megacore sharding on v7x
    )(sample, trimap)


# ---------------------------------------------------------------------------
# Synthetic diffusion sampler stand-in (the real sampler / denoising model are
# external injected sub-modules, not defined by the DifMatte class itself).
# ---------------------------------------------------------------------------
def _synthetic_ddpm_sample(model, shape, batched_inputs, **kwargs):
    # TODO(synk): diffusion.ddpm_sample / ddim_sample and the denoising `model`
    # are injected external modules with no definition in this class; emit a
    # deterministic surrogate sample so the DifMatte post-processing path can
    # be exercised end-to-end.
    dtype = kwargs.get("dtype", jnp.float32)
    img = batched_inputs["image"]
    x = jnp.mean(img, axis=1, keepdims=True)          # (B, 1, H, W)
    x = 1.5 * jnp.tanh(x)                              # spills outside [0,1] -> exercises clamp
    assert x.shape == tuple(shape)
    return x.astype(dtype)


# ---------------------------------------------------------------------------
# DifMatte meta-arch (inference forward path)
# ---------------------------------------------------------------------------
class DifMatte:
    def __init__(self, *, model, diffusion, input_format, size_divisibility, args):
        self.model = model
        self.diffusion = diffusion          # dict of injected sampler callables
        self.input_format = input_format
        self.size_divisibility = size_divisibility
        self.args = args
        self.training = False

    def forward(self, batched_inputs, t=None, self_align_stage1=False,
                self_align_stage2=False, time_interval=0, sample_iter=10,
                alpha=None):
        if time_interval != 0:
            sample_list = [it + time_interval - 1 for it in range(sample_iter + 1)]
        else:
            sample_list = None

        if self.training:
            # TODO(synk): training path delegates entirely to
            # diffusion.training_losses (external injected module).
            raise NotImplementedError("training path not reproducible from this class")

        trimap = batched_inputs["trimap"]
        if self.diffusion["uniform_timesteps"]:
            sample_fn = (self.diffusion["ddpm_sample"]
                         if not self.args["use_ddim"]
                         else self.diffusion["ddim_sample"])
            sample = sample_fn(self.model, trimap.shape, batched_inputs,
                               sample_list=sample_list, GTalpha=alpha,
                               dtype=trimap.dtype)
        else:
            sample_fn = (self.diffusion["p_sample_loop"]
                         if not self.args["use_ddim"]
                         else self.diffusion["ddim_sample_loop"])
            sample = sample_fn(self.model, trimap.shape, batched_inputs,
                               clip_denoised=self.args["clip_denoised"],
                               model_kwargs=None, dtype=trimap.dtype)

        if sample_list is None:
            # Fused clamp + trimap-overwrite + *255 on the [0, 0] slab; the
            # slab is selected inside the kernel's BlockSpec (no slice copies).
            return _postprocess_alpha(sample, trimap)
        else:
            return sample


# ---------------------------------------------------------------------------
def _reference_postprocess(sample, trimap):
    ref = jnp.clip(sample, 0.0, 1.0)
    ref = jnp.where(trimap == 0.0, 0.0, ref)
    ref = jnp.where(trimap == 2.0, 1.0, ref)
    return ref[0, 0, ...] * 255.0


if __name__ == "__main__":
    key = jax.random.PRNGKey(0)
    k_img, k_tri, k_s2, k_t2 = jax.random.split(key, 4)

    # ---- end-to-end DifMatte forward at small shapes --------------------
    B, H, W = 2, 16, 16
    image = jax.random.normal(k_img, (B, 3, H, W), jnp.float32)
    trimap = jax.random.randint(k_tri, (B, 1, H, W), 0, 3).astype(jnp.float32)
    batched_inputs = {"image": image, "trimap": trimap}

    net = DifMatte(
        model=None,   # injected denoiser (external); unused by surrogate sampler
        diffusion={
            "uniform_timesteps": True,
            "ddpm_sample": _synthetic_ddpm_sample,
            "ddim_sample": _synthetic_ddpm_sample,
            "p_sample_loop": _synthetic_ddpm_sample,
            "ddim_sample_loop": _synthetic_ddpm_sample,
        },
        input_format="RGB",
        size_divisibility=32,
        args={"use_ddim": False, "clip_denoised": True},
    )

    out = net.forward(batched_inputs)
    out = jax.block_until_ready(out)
    assert out.shape == (H, W), out.shape

    sample = _synthetic_ddpm_sample(None, trimap.shape, batched_inputs,
                                    sample_list=None, GTalpha=None,
                                    dtype=trimap.dtype)
    ref = _reference_postprocess(sample, trimap)
    assert jnp.allclose(out, ref, atol=1e-5), float(jnp.max(jnp.abs(out - ref)))

    # ---- multi-tile / remainder-block / non-128-lane path ---------------
    B2, H2, W2 = 2, 44, 48                      # H2 not a multiple of the tile
    s2 = 2.0 * jax.random.normal(k_s2, (B2, 1, H2, W2), jnp.float32)
    t2 = jax.random.randint(k_t2, (B2, 1, H2, W2), 0, 3).astype(jnp.float32)
    # Force tile_r = 8 -> 6 grid steps incl. a partial last block.
    out2 = _postprocess_alpha(s2, t2, block_bytes=W2 * 4 * 8)
    out2 = jax.block_until_ready(out2)
    ref2 = _reference_postprocess(s2, t2)
    assert out2.shape == (H2, W2), out2.shape
    assert jnp.allclose(out2, ref2, atol=1e-5), float(jnp.max(jnp.abs(out2 - ref2)))

    print("KERNEL_OK")
</pallas_src>

<mosaic_0001>
module attributes {stable_mosaic.version = 11 : i64} {
  func.func @_postprocess_kernel(%arg0: i32, %arg1: memref<1x1x16x16xf32, #tpu.memory_space<vmem>>, %arg2: memref<1x1x16x16xf32, #tpu.memory_space<vmem>>, %arg3: memref<16x16xf32, #tpu.memory_space<vmem>>) attributes {dimension_semantics = [#tpu.dimension_semantics<parallel>], iteration_bounds = array<i64: 1>, scalar_prefetch = 0 : i64, scratch_operands = 0 : i64, tpu.core_type = #tpu.core_type<tc>, window_params = [{transform_indices = @transform_0, window_bounds = array<i64: 1, 1, 16, 16>}, {transform_indices = @transform_1, window_bounds = array<i64: 1, 1, 16, 16>}, {transform_indices = @transform_2, window_bounds = array<i64: 16, 16>}]} {
    %c0 = arith.constant 0 : index
    %c0_0 = arith.constant 0 : index
    %c0_1 = arith.constant 0 : index
    %c0_2 = arith.constant 0 : index
    %0 = vector.load %arg1[%c0, %c0_0, %c0_1, %c0_2] : memref<1x1x16x16xf32, #tpu.memory_space<vmem>>, vector<1x1x16x16xf32>
    %1 = vector.shape_cast %0 : vector<1x1x16x16xf32> to vector<16x16xf32>
    %cst = arith.constant 0.000000e+00 : f32
    %cst_3 = arith.constant 1.000000e+00 : f32
    %2 = vector.broadcast %cst : f32 to vector<16x16xf32>
    %3 = arith.maximumf %2, %1 : vector<16x16xf32>
    %4 = vector.broadcast %cst_3 : f32 to vector<16x16xf32>
    %5 = arith.minimumf %4, %3 : vector<16x16xf32>
    %c0_4 = arith.constant 0 : index
    %c0_5 = arith.constant 0 : index
    %c0_6 = arith.constant 0 : index
    %c0_7 = arith.constant 0 : index
    %6 = vector.load %arg2[%c0_4, %c0_5, %c0_6, %c0_7] : memref<1x1x16x16xf32, #tpu.memory_space<vmem>>, vector<1x1x16x16xf32>
    %7 = vector.shape_cast %6 : vector<1x1x16x16xf32> to vector<16x16xf32>
    %cst_8 = arith.constant 0.000000e+00 : f32
    %8 = vector.broadcast %cst_8 : f32 to vector<16x16xf32>
    %9 = arith.cmpf oeq, %7, %8 : vector<16x16xf32>
    %cst_9 = arith.constant 0.000000e+00 : f32
    %10 = vector.broadcast %cst_9 : f32 to vector<16x16xf32>
    %11 = arith.select %9, %10, %5 : vector<16x16xi1>, vector<16x16xf32>
    %cst_10 = arith.constant 2.000000e+00 : f32
    %12 = vector.broadcast %cst_10 : f32 to vector<16x16xf32>
    %13 = arith.cmpf oeq, %7, %12 : vector<16x16xf32>
    %cst_11 = arith.constant 1.000000e+00 : f32
    %14 = vector.broadcast %cst_11 : f32 to vector<16x16xf32>
    %15 = arith.select %13, %14, %11 : vector<16x16xi1>, vector<16x16xf32>
    %cst_12 = arith.constant 2.550000e+02 : f32
    %16 = vector.broadcast %cst_12 : f32 to vector<16x16xf32>
    %17 = arith.mulf %15, %16 : vector<16x16xf32>
    %c0_13 = arith.constant 0 : index
    %c0_14 = arith.constant 0 : index
    %18 = vector.load %arg3[%c0_13, %c0_14] : memref<16x16xf32, #tpu.memory_space<vmem>>, vector<16x16xf32>
    tpu.vector_store %arg3[%c0_13, %c0_14], %17 {strides = array<i32>} : memref<16x16xf32, #tpu.memory_space<vmem>>, vector<16x16xf32>,
    return
  }
  func.func @transform_0(%arg0: i32) -> (i32, i32, i32, i32) {
    %c0_i32 = arith.constant 0 : i32
    %c0_i32_0 = arith.constant 0 : i32
    %c0_i32_1 = arith.constant 0 : i32
    %c0_i32_2 = arith.constant 0 : i32
    return %c0_i32, %c0_i32_0, %arg0, %c0_i32_1 : i32, i32, i32, i32
  }
  func.func @transform_1(%arg0: i32) -> (i32, i32, i32, i32) {
    %c0_i32 = arith.constant 0 : i32
    %c0_i32_0 = arith.constant 0 : i32
    %c0_i32_1 = arith.constant 0 : i32
    %c0_i32_2 = arith.constant 0 : i32
    return %c0_i32, %c0_i32_0, %arg0, %c0_i32_1 : i32, i32, i32, i32
  }
  func.func @transform_2(%arg0: i32) -> (i32, i32) {
    %c0_i32 = arith.constant 0 : i32
    %c0_i32_0 = arith.constant 0 : i32
    return %arg0, %c0_i32 : i32, i32
  }
}

</mosaic_0001>

<llo_original>
// kernel: tpu_custom_call.1
$region0: #{tpu_custom_call.1}
  #allocation0 [shape = 'u32[]', space=smem, size = 0x4, offset = 0x4, fixed_abs, tag = 'smem constant byte address 0x4 - core index']
  #allocation1 [shape = 'u32[144,128]{1,0:T(1,128)}', space=vmem, size = 0x12000, scoped, tag = 'internal scratch']
  %s0 = inlined_call_operand.hbm [shape: f32[2,1,16,16], index: 0, kind: input, shape index: {}]
  %s1 = inlined_call_operand.hbm [shape: f32[2,1,16,16], index: 1, kind: input, shape index: {}]
  %s2 = inlined_call_operand.hbm [shape: f32[16,16], index: 2, kind: output, shape index: {}]
  %s3 = sld [smem:[#allocation0]]
  $region26: #{tpu_custom_call.1} parent=0
    _
  %s5 = ssub.s32 1, %s3
  %s6 = scalar_select 0, %s5, %s3
  $region1: #{tpu_custom_call.1} parent=0
    #allocation2 [shape = 'u8[8192]{0}', space=vmem, size = 0x2000, scoped, tag = 'input window, operand 0, single buffered']
    #allocation3 [shape = 's32[1]{0}', space=sflag, size = 0x4, scoped, tag = 'scoped memory for tpu_custom_call.1']
    #allocation4 [shape = 's32[1]{0}', space=sflag, size = 0x4, scoped, tag = 'scoped memory for tpu_custom_call.1']
    #allocation5 [shape = 'u8[8192]{0}', space=vmem, size = 0x2000, scoped, tag = 'input window, operand 1, single buffered']
    #allocation6 [shape = 's32[1]{0}', space=sflag, size = 0x4, scoped, tag = 'scoped memory for tpu_custom_call.1']
    #allocation7 [shape = 'u8[8192]{0}', space=vmem, size = 0x2000, scoped, tag = 'output window, operand 0, single buffered']
    %7 = vsyncpa [#allocation3], 0
    %8 = vsyncpa [#allocation6], 0
    %9 = vsyncpa [#allocation4], 0
    // Predicated region
    $region2: #{tpu_custom_call.1} parent=1 // pred_check
      _
    $region3: #{tpu_custom_call.1} parent=1 // pred_check_branch
      %11 = sbr.rel (0) target = $region5
    $region4: #{tpu_custom_call.1} parent=1 // pred_region
      %s13 = ssub.s32 256, 256
      %14 = vsyncadd [#allocation3], %s13
      %s15 = sshll.u32 [#allocation2], 4
      %s16 = int_to_ptr.vmem [resolvable:$true] %s15
      %21 = dma.hbm_to_vmem [thread:$0]  %s0, 256, %s16, [#allocation3], 128, 128, 8
    $region5: #{tpu_custom_call.1} parent=1 // pred_fallthru
      _
    // Predicated region
    $region6: #{tpu_custom_call.1} parent=1 // pred_check
      _
    $region7: #{tpu_custom_call.1} parent=1 // pred_check_branch
      %23 = sbr.rel (0) target = $region9
    $region8: #{tpu_custom_call.1} parent=1 // pred_region
      %s25 = ssub.s32 256, 256
      %26 = vsyncadd [#allocation6], %s25
      %s27 = sshll.u32 [#allocation5], 4
      %s28 = int_to_ptr.vmem [resolvable:$true] %s27
      %33 = dma.hbm_to_vmem [thread:$0]  %s1, 256, %s28, [#allocation6], 128, 128, 8
    $region9: #{tpu_custom_call.1} parent=1 // pred_fallthru
      _
    // Predicated region
    $region10: #{tpu_custom_call.1} parent=1 // pred_check
      _
    $region11: #{tpu_custom_call.1} parent=1 // pred_check_branch
      %35 = sbr.rel (0) target = $region13
    $region12: #{tpu_custom_call.1} parent=1 // pred_region
      %36 = dma.done [#allocation3], 256
    $region13: #{tpu_custom_call.1} parent=1 // pred_fallthru
      _
    // Predicated region
    $region14: #{tpu_custom_call.1} parent=1 // pred_check
      _
    $region15: #{tpu_custom_call.1} parent=1 // pred_check_branch
      %38 = sbr.rel (0) target = $region17
    $region16: #{tpu_custom_call.1} parent=1 // pred_region
      %39 = dma.done [#allocation6], 256
    $region17: #{tpu_custom_call.1} parent=1 // pred_fallthru
      _
    %v40 = vld [vmem:[#allocation2] sm:$0xff]
    %v41 = vld [vmem:[#allocation2 + $0x8] sm:$0xff]
    %v42 = vmax.f32 %v40, 0.0
    %v43 = vmax.f32 %v41, 0.0
    %v44 = vmin.f32 %v42, 1.0
    %v45 = vmin.f32 %v43, 1.0
    %v46 = vld [vmem:[#allocation5] sm:$0xff]
    %v47 = vld [vmem:[#allocation5 + $0x8] sm:$0xff]
    %vm48 = vcmp.eq.f32.partialorder %v46, 0.0
    %vm49 = vcmp.eq.f32.partialorder %v47, 0.0
    %v50 = vsel %vm48, 0.0, %v44
    %v51 = vsel %vm49, 0.0, %v45
    %vm52 = vcmp.eq.f32.partialorder %v46, 2.0
    %vm53 = vcmp.eq.f32.partialorder %v47, 2.0
    %v54 = vsel %vm52, 1.0, %v50
    %v55 = vsel %vm53, 1.0, %v51
    %v56 = vmul.f32 %v54, 255.0
    %v57 = vmul.f32 %v55, 255.0
    %vm58 = vcmask 130048
    %59 = vst.msk [vmem:[#allocation7] sm:$0xff] %vm58, %v56
    %60 = vst.msk [vmem:[#allocation7 + $0x8] sm:$0xff] %vm58, %v57
    // Predicated region
    $region18: #{tpu_custom_call.1} parent=1 // pred_check
      _
    $region19: #{tpu_custom_call.1} parent=1 // pred_check_branch
      %62 = sbr.rel (0) target = $region21
    $region20: #{tpu_custom_call.1} parent=1 // pred_region
      %s64 = ssub.s32 256, 256
      %65 = vsyncadd [#allocation4], %s64
      %s66 = sshll.u32 [#allocation7], 4
      %s67 = int_to_ptr.vmem [resolvable:$true] %s66
      %72 = dma.vmem_to_hbm [thread:$0]  %s67, 256, %s2, [#allocation4], 128, 128, 8
    $region21: #{tpu_custom_call.1} parent=1 // pred_fallthru
      _
    // Predicated region
    $region22: #{tpu_custom_call.1} parent=1 // pred_check
      _
    $region23: #{tpu_custom_call.1} parent=1 // pred_check_branch
      %74 = sbr.rel (0) target = $region25
    $region24: #{tpu_custom_call.1} parent=1 // pred_region
      %75 = dma.done [#allocation4], 256
    $region25: #{tpu_custom_call.1} parent=1 // pred_fallthru
      _
    %76 = vsyncpa [#allocation3], 1
    %77 = vsyncpa [#allocation6], 1
    %78 = vsyncpa [#allocation4], 1

</llo_original>
